<compile_context>
chip_gen: v6e
topology: v6e:2x2x1
jax: 0.10.0
libtpu: 0.0.40
codegen_flags: <defaults>
</compile_context>

<pallas_src>
import jax
import jax.numpy as jnp
from jax.experimental import pallas as pl
from jax.experimental.pallas import tpu as pltpu

NUM_LMS = 2                      # sigmoid closed-form softmax assumes 2 LMs
EMB_SIZES = (32, 48)             # embedding_length of each synthetic LM
PROJ = max(EMB_SIZES)            # projection_size = max(embedding_sizes) = 48
BATCH = 8
LN_EPS = 1e-3                    # torch.nn.LayerNorm(norm_size, eps=0.001)

LANE = 128                       # lane width / per-LM output stride
K_PAD = 128                      # padded contraction dim (sum(D_i)+1 = 81 -> 128)
BIAS_ROW = sum(EMB_SIZES)        # row of the weight block holding biases (= 80)
N_PAD = NUM_LMS * LANE           # fused matmul output width (= 256)
P_ROWS = 8                       # extra param rows appended below the weight block
ROW_GAMMA, ROW_BETA, ROW_ATTNW, ROW_OH0, ROW_OH1 = 0, 1, 2, 3, 4


def multi_encoder_dme_kernel(x_ref, wp_ref, out_ref):
    # 1. fused block-diagonal projection (biases come from the ones-column row).
    #    MXU f32 precision is backend-default; measured error vs. the pure-f32
    #    reference stays well inside the 1e-4 tolerance at these magnitudes.
    y = jnp.dot(x_ref[:, :], wp_ref[:K_PAD, :],
                preferred_element_type=jnp.float32)            # [bb, L*128]

    # grid-invariant params as [1, 128] rows -> implicit (free) sublane broadcast
    p = wp_ref[K_PAD:, :LANE]                                  # [8, 128]
    gamma = p[ROW_GAMMA:ROW_GAMMA + 1, :]                      # zero-padded past PROJ
    beta = p[ROW_BETA:ROW_BETA + 1, :]
    attnw = p[ROW_ATTNW:ROW_ATTNW + 1, :]
    oh0 = p[ROW_OH0:ROW_OH0 + 1, :]                            # one-hot at lane 48
    oh1 = p[ROW_OH1:ROW_OH1 + 1, :]                            # one-hot at lane 49

    inv_p = 1.0 / PROJ
    yns, scores = [], []
    for i in range(NUM_LMS):                                   # static unroll (L=2)
        chunk = y[:, i * LANE:(i + 1) * LANE]                  # lane-tile aligned slice
        # padded lanes of `chunk` are exact zeros (zero W columns / zero bias),
        # so 128-lane sums equal the sums over the 48 real lanes.
        mu = jnp.sum(chunk, axis=-1, keepdims=True) * inv_p
        ex2 = jnp.sum(chunk * chunk, axis=-1, keepdims=True) * inv_p
        var = ex2 - mu * mu
        # padded lanes: gamma/beta are zero there -> yn padded lanes stay exact zero
        yn = (chunk - mu) * jax.lax.rsqrt(var + LN_EPS) * gamma + beta
        yns.append(yn)
        # DME attention score Linear(P,1); bias omitted (cancels in softmax)
        scores.append(jnp.sum(yn * attnw, axis=-1, keepdims=True))   # [bb, 1]

    # 2-way softmax closed form: a0 = sigmoid(s0 - s1), a1 = 1 - a0 (exact)
    a0 = 1.0 / (1.0 + jnp.exp(scores[1] - scores[0]))
    a1 = 1.0 - a0

    # weighted sum + attention weights packed at lanes 48/49 via one-hot FMAs
    # (yn lanes >= 48 are exact zeros, so the one-hots land on clean lanes)
    out_ref[...] = a0 * (yns[0] + oh0) + a1 * (yns[1] + oh1)   # [bb, 128]


def _round_up(x, m):
    return ((x + m - 1) // m) * m


def multi_encoder_forward(embeddings, wp):
    """embeddings: list of [B, D_i] float32 CLS outputs; wp: packed [136, 256] params."""
    B = embeddings[0].shape[0]

    # pack inputs: [emb_0 | emb_1 | 1.0 | zero-pad] -> [B, 128] (single x DMA)
    pad_cols = K_PAD - (sum(EMB_SIZES) + 1)
    x = jnp.concatenate(
        [e.astype(jnp.float32) for e in embeddings]
        + [jnp.ones((B, 1), jnp.float32), jnp.zeros((B, pad_cols), jnp.float32)],
        axis=-1)

    # batch tile: as large as useful (cap 1024), but split the work >= 2 ways so
    # the "parallel" batch axis can spread across v7x's two TensorCores.
    block_b = min(1024, max(8, _round_up(pl.cdiv(B, 2), 8)))
    bp = _round_up(B, block_b)
    if bp != B:
        # padded rows are all-zero x -> finite (beta-valued) slab rows; sliced off below.
        x = jnp.pad(x, ((0, bp - B), (0, 0)))

    slab = pl.pallas_call(
        multi_encoder_dme_kernel,
        out_shape=jax.ShapeDtypeStruct((bp, LANE), jnp.float32),
        grid=(bp // block_b,),
        in_specs=[
            pl.BlockSpec((block_b, K_PAD), lambda i: (i, 0)),
            pl.BlockSpec((K_PAD + P_ROWS, N_PAD), lambda i: (0, 0)),
        ],
        out_specs=pl.BlockSpec((block_b, LANE), lambda i: (i, 0)),
        compiler_params=pltpu.CompilerParams(
            dimension_semantics=("parallel",)),
    )(x, wp)

    out = slab[:B, :PROJ]
    attn = slab[:B, PROJ:PROJ + NUM_LMS]
    return out, attn


def init_params(key):
    """Raw params matching MultiEncoder.__init__ (per-LM Linear, LayerNorm, attention)."""
    keys = jax.random.split(key, 2 * NUM_LMS + 2)
    Ws, bs = [], []
    for i, d in enumerate(EMB_SIZES):
        Ws.append(jax.random.normal(keys[2 * i], (d, PROJ), jnp.float32) * 0.05)
        bs.append(jax.random.normal(keys[2 * i + 1], (PROJ,), jnp.float32) * 0.05)
    gamma = jnp.ones((PROJ,), jnp.float32)                    # LayerNorm weight
    beta = jnp.zeros((PROJ,), jnp.float32)                    # LayerNorm bias
    attn_w = jax.random.normal(keys[-2], (PROJ,), jnp.float32) * 0.05
    attn_b = jax.random.normal(keys[-1], (), jnp.float32) * 0.05
    return Ws, bs, gamma, beta, attn_w, attn_b


def pack_params(raw):
    """Pack ALL kernel parameters into ONE array:
       rows [0:128]   block-diagonal projection weights (+bias row 80)
       rows [128:136] gamma / beta / attn_w / one-hot(48) / one-hot(49) in lanes 0:128
    """
    Ws, bs, gamma, beta, attn_w, _attn_b = raw   # attn bias cancels in softmax
    # layout invariants the kernel's zero-padding tricks rely on:
    assert sum(EMB_SIZES) + 1 <= K_PAD, "ones-column must fit in the K padding"
    assert PROJ + NUM_LMS <= LANE, "attn-weight lanes must fit beside the embedding"
    assert NUM_LMS == 2, "closed-form sigmoid softmax assumes exactly 2 LMs"

    wp = jnp.zeros((K_PAD + P_ROWS, N_PAD), jnp.float32)
    row = 0
    for i, d in enumerate(EMB_SIZES):
        wp = wp.at[row:row + d, i * LANE:i * LANE + PROJ].set(Ws[i])
        wp = wp.at[BIAS_ROW, i * LANE:i * LANE + PROJ].set(bs[i])
        row += d
    wp = wp.at[K_PAD + ROW_GAMMA, :PROJ].set(gamma)
    wp = wp.at[K_PAD + ROW_BETA, :PROJ].set(beta)
    wp = wp.at[K_PAD + ROW_ATTNW, :PROJ].set(attn_w)
    wp = wp.at[K_PAD + ROW_OH0, PROJ].set(1.0)
    wp = wp.at[K_PAD + ROW_OH1, PROJ + 1].set(1.0)
    return wp


def reference_forward(embeddings, raw):
    """Pure-JAX reference mirroring MultiEncoder.forward (dme + layer_norm)."""
    Ws, bs, gamma, beta, attn_w, attn_b = raw
    projs = []
    for i, e in enumerate(embeddings):
        y = e @ Ws[i] + bs[i]
        mu = jnp.mean(y, axis=-1, keepdims=True)
        var = jnp.mean((y - mu) ** 2, axis=-1, keepdims=True)
        projs.append((y - mu) / jnp.sqrt(var + LN_EPS) * gamma + beta)
    stacked = jnp.stack(projs, axis=1)                        # [B, L, P]
    scores = stacked @ attn_w[:, None] + attn_b               # [B, L, 1]
    a = jax.nn.softmax(scores, axis=1)
    out = jnp.sum(a * stacked, axis=1)
    return out, a[..., 0]


if __name__ == "__main__":
    key = jax.random.PRNGKey(0)
    k_emb1, k_emb2, k_par = jax.random.split(key, 3)
    # synthetic CLS embeddings from the two "LanguageModels"
    emb1 = jax.random.normal(k_emb1, (BATCH, EMB_SIZES[0]), jnp.float32)
    emb2 = jax.random.normal(k_emb2, (BATCH, EMB_SIZES[1]), jnp.float32)

    raw_params = init_params(k_par)
    wp = pack_params(raw_params)

    out, attn = multi_encoder_forward([emb1, emb2], wp)
    out, attn = jax.block_until_ready((out, attn))

    ref_out, ref_attn = reference_forward([emb1, emb2], raw_params)
    assert out.shape == (BATCH, PROJ) and attn.shape == (BATCH, NUM_LMS)
    assert jnp.allclose(out, ref_out, atol=1e-4, rtol=1e-4)
    assert jnp.allclose(attn, ref_attn, atol=1e-5, rtol=1e-4)
    print("KERNEL_OK")
</pallas_src>

<mosaic_0001>
module attributes {stable_mosaic.version = 11 : i64} {
  func.func @multi_encoder_dme_kernel(%arg0: i32, %arg1: memref<8x128xf32, #tpu.memory_space<vmem>>, %arg2: memref<136x256xf32, #tpu.memory_space<vmem>>, %arg3: memref<8x128xf32, #tpu.memory_space<vmem>>) attributes {dimension_semantics = [#tpu.dimension_semantics<parallel>], iteration_bounds = array<i64: 1>, scalar_prefetch = 0 : i64, scratch_operands = 0 : i64, tpu.core_type = #tpu.core_type<tc>, window_params = [{transform_indices = @transform_0, window_bounds = array<i64: 8, 128>}, {pipeline_mode = #tpu.pipeline_mode<synchronous>, transform_indices = @transform_1, window_bounds = array<i64: 136, 256>}, {transform_indices = @transform_2, window_bounds = array<i64: 8, 128>}]} {
    %c0 = arith.constant 0 : index
    %c0_0 = arith.constant 0 : index
    %0 = vector.load %arg1[%c0, %c0_0] : memref<8x128xf32, #tpu.memory_space<vmem>>, vector<8x128xf32>
    %c0_1 = arith.constant 0 : index
    %c0_2 = arith.constant 0 : index
    %1 = vector.load %arg2[%c0_1, %c0_2] : memref<136x256xf32, #tpu.memory_space<vmem>>, vector<128x256xf32>
    %cst = arith.constant dense<0.000000e+00> : vector<8x256xf32>
    %2 = tpu.matmul %0, %1, %cst {dimension_numbers = #tpu.dot_dimension_numbers<[1], [0], [0], [1], [0, 0, 1, 1], [], []>} : vector<8x128xf32>, vector<128x256xf32>, vector<8x256xf32> -> vector<8x256xf32>
    %c128 = arith.constant 128 : index
    %c0_3 = arith.constant 0 : index
    %3 = vector.load %arg2[%c128, %c0_3] : memref<136x256xf32, #tpu.memory_space<vmem>>, vector<8x128xf32>
    %4 = vector.extract_strided_slice %3 {offsets = [0, 0], sizes = [1, 128], strides = [1, 1]} : vector<8x128xf32> to vector<1x128xf32>
    %5 = vector.extract_strided_slice %3 {offsets = [1, 0], sizes = [1, 128], strides = [1, 1]} : vector<8x128xf32> to vector<1x128xf32>
    %6 = vector.extract_strided_slice %3 {offsets = [2, 0], sizes = [1, 128], strides = [1, 1]} : vector<8x128xf32> to vector<1x128xf32>
    %7 = vector.extract_strided_slice %3 {offsets = [3, 0], sizes = [1, 128], strides = [1, 1]} : vector<8x128xf32> to vector<1x128xf32>
    %8 = vector.extract_strided_slice %3 {offsets = [4, 0], sizes = [1, 128], strides = [1, 1]} : vector<8x128xf32> to vector<1x128xf32>
    %9 = vector.extract_strided_slice %2 {offsets = [0, 0], sizes = [8, 128], strides = [1, 1]} : vector<8x256xf32> to vector<8x128xf32>
    %cst_4 = arith.constant dense<0.000000e+00> : vector<8xf32>
    %10 = vector.multi_reduction <add>, %9, %cst_4 [1] : vector<8x128xf32> to vector<8xf32>
    %11 = vector.shape_cast %10 : vector<8xf32> to vector<8x1xf32>
    %cst_5 = arith.constant 0.020833334 : f32
    %12 = vector.broadcast %cst_5 : f32 to vector<8x1xf32>
    %13 = arith.mulf %11, %12 : vector<8x1xf32>
    %14 = arith.mulf %9, %9 : vector<8x128xf32>
    %cst_6 = arith.constant dense<0.000000e+00> : vector<8xf32>
    %15 = vector.multi_reduction <add>, %14, %cst_6 [1] : vector<8x128xf32> to vector<8xf32>
    %16 = vector.shape_cast %15 : vector<8xf32> to vector<8x1xf32>
    %cst_7 = arith.constant 0.020833334 : f32
    %17 = vector.broadcast %cst_7 : f32 to vector<8x1xf32>
    %18 = arith.mulf %16, %17 : vector<8x1xf32>
    %19 = arith.mulf %13, %13 : vector<8x1xf32>
    %20 = arith.subf %18, %19 : vector<8x1xf32>
    %21 = vector.broadcast %13 : vector<8x1xf32> to vector<8x128xf32>
    %22 = arith.subf %9, %21 : vector<8x128xf32>
    %cst_8 = arith.constant 1.000000e-03 : f32
    %23 = vector.broadcast %cst_8 : f32 to vector<8x1xf32>
    %24 = arith.addf %20, %23 : vector<8x1xf32>
    %25 = math.rsqrt %24 : vector<8x1xf32>
    %26 = vector.broadcast %25 : vector<8x1xf32> to vector<8x128xf32>
    %27 = arith.mulf %22, %26 : vector<8x128xf32>
    %28 = vector.broadcast %4 : vector<1x128xf32> to vector<8x128xf32>
    %29 = arith.mulf %27, %28 : vector<8x128xf32>
    %30 = vector.broadcast %5 : vector<1x128xf32> to vector<8x128xf32>
    %31 = arith.addf %29, %30 : vector<8x128xf32>
    %32 = vector.broadcast %6 : vector<1x128xf32> to vector<8x128xf32>
    %33 = arith.mulf %31, %32 : vector<8x128xf32>
    %cst_9 = arith.constant dense<0.000000e+00> : vector<8xf32>
    %34 = vector.multi_reduction <add>, %33, %cst_9 [1] : vector<8x128xf32> to vector<8xf32>
    %35 = vector.shape_cast %34 : vector<8xf32> to vector<8x1xf32>
    %36 = vector.extract_strided_slice %2 {offsets = [0, 128], sizes = [8, 128], strides = [1, 1]} : vector<8x256xf32> to vector<8x128xf32>
    %cst_10 = arith.constant dense<0.000000e+00> : vector<8xf32>
    %37 = vector.multi_reduction <add>, %36, %cst_10 [1] : vector<8x128xf32> to vector<8xf32>
    %38 = vector.shape_cast %37 : vector<8xf32> to vector<8x1xf32>
    %cst_11 = arith.constant 0.020833334 : f32
    %39 = vector.broadcast %cst_11 : f32 to vector<8x1xf32>
    %40 = arith.mulf %38, %39 : vector<8x1xf32>
    %41 = arith.mulf %36, %36 : vector<8x128xf32>
    %cst_12 = arith.constant dense<0.000000e+00> : vector<8xf32>
    %42 = vector.multi_reduction <add>, %41, %cst_12 [1] : vector<8x128xf32> to vector<8xf32>
    %43 = vector.shape_cast %42 : vector<8xf32> to vector<8x1xf32>
    %cst_13 = arith.constant 0.020833334 : f32
    %44 = vector.broadcast %cst_13 : f32 to vector<8x1xf32>
    %45 = arith.mulf %43, %44 : vector<8x1xf32>
    %46 = arith.mulf %40, %40 : vector<8x1xf32>
    %47 = arith.subf %45, %46 : vector<8x1xf32>
    %48 = vector.broadcast %40 : vector<8x1xf32> to vector<8x128xf32>
    %49 = arith.subf %36, %48 : vector<8x128xf32>
    %cst_14 = arith.constant 1.000000e-03 : f32
    %50 = vector.broadcast %cst_14 : f32 to vector<8x1xf32>
    %51 = arith.addf %47, %50 : vector<8x1xf32>
    %52 = math.rsqrt %51 : vector<8x1xf32>
    %53 = vector.broadcast %52 : vector<8x1xf32> to vector<8x128xf32>
    %54 = arith.mulf %49, %53 : vector<8x128xf32>
    %55 = vector.broadcast %4 : vector<1x128xf32> to vector<8x128xf32>
    %56 = arith.mulf %54, %55 : vector<8x128xf32>
    %57 = vector.broadcast %5 : vector<1x128xf32> to vector<8x128xf32>
    %58 = arith.addf %56, %57 : vector<8x128xf32>
    %59 = vector.broadcast %6 : vector<1x128xf32> to vector<8x128xf32>
    %60 = arith.mulf %58, %59 : vector<8x128xf32>
    %cst_15 = arith.constant dense<0.000000e+00> : vector<8xf32>
    %61 = vector.multi_reduction <add>, %60, %cst_15 [1] : vector<8x128xf32> to vector<8xf32>
    %62 = vector.shape_cast %61 : vector<8xf32> to vector<8x1xf32>
    %63 = arith.subf %62, %35 : vector<8x1xf32>
    %64 = math.exp %63 : vector<8x1xf32>
    %cst_16 = arith.constant 1.000000e+00 : f32
    %65 = vector.broadcast %cst_16 : f32 to vector<8x1xf32>
    %66 = arith.addf %65, %64 : vector<8x1xf32>
    %cst_17 = arith.constant 1.000000e+00 : f32
    %67 = vector.broadcast %cst_17 : f32 to vector<8x1xf32>
    %68 = arith.divf %67, %66 : vector<8x1xf32>
    %cst_18 = arith.constant 1.000000e+00 : f32
    %69 = vector.broadcast %cst_18 : f32 to vector<8x1xf32>
    %70 = arith.subf %69, %68 : vector<8x1xf32>
    %71 = vector.broadcast %7 : vector<1x128xf32> to vector<8x128xf32>
    %72 = arith.addf %31, %71 : vector<8x128xf32>
    %73 = vector.broadcast %68 : vector<8x1xf32> to vector<8x128xf32>
    %74 = arith.mulf %73, %72 : vector<8x128xf32>
    %75 = vector.broadcast %8 : vector<1x128xf32> to vector<8x128xf32>
    %76 = arith.addf %58, %75 : vector<8x128xf32>
    %77 = vector.broadcast %70 : vector<8x1xf32> to vector<8x128xf32>
    %78 = arith.mulf %77, %76 : vector<8x128xf32>
    %79 = arith.addf %74, %78 : vector<8x128xf32>
    %c0_19 = arith.constant 0 : index
    %c0_20 = arith.constant 0 : index
    %80 = vector.load %arg3[%c0_19, %c0_20] : memref<8x128xf32, #tpu.memory_space<vmem>>, vector<8x128xf32>
    tpu.vector_store %arg3[%c0_19, %c0_20], %79 {strides = array<i32>} : memref<8x128xf32, #tpu.memory_space<vmem>>, vector<8x128xf32>,
    return
  }
  func.func @transform_0(%arg0: i32) -> (i32, i32) {
    %c0_i32 = arith.constant 0 : i32
    %c0_i32_0 = arith.constant 0 : i32
    return %arg0, %c0_i32 : i32, i32
  }
  func.func @transform_1(%arg0: i32) -> (i32, i32) {
    %c0_i32 = arith.constant 0 : i32
    %c0_i32_0 = arith.constant 0 : i32
    %c0_i32_1 = arith.constant 0 : i32
    return %c0_i32, %c0_i32_0 : i32, i32
  }
  func.func @transform_2(%arg0: i32) -> (i32, i32) {
    %c0_i32 = arith.constant 0 : i32
    %c0_i32_0 = arith.constant 0 : i32
    return %arg0, %c0_i32 : i32, i32
  }
}

</mosaic_0001>

<llo_original>
// kernel: tpu_custom_call.1
$region0: #{tpu_custom_call.1}
  #allocation0 [shape = 'u32[]', space=smem, size = 0x4, offset = 0x4, fixed_abs, tag = 'smem constant byte address 0x4 - core index']
  #allocation1 [shape = 'u32[144,128]{1,0:T(1,128)}', space=vmem, size = 0x12000, scoped, tag = 'internal scratch']
  %s0 = inlined_call_operand.hbm [shape: f32[8,128], index: 0, kind: input, shape index: {}]
  %s1 = inlined_call_operand.hbm [shape: f32[136,256], index: 1, kind: input, shape index: {}]
  %s2 = inlined_call_operand.hbm [shape: f32[8,128], index: 2, kind: output, shape index: {}]
  %s3 = sld [smem:[#allocation0]]
  $region26: #{tpu_custom_call.1} parent=0
    _
  %s5 = ssub.s32 1, %s3
  %s6 = scalar_select 0, %s5, %s3
  $region1: #{tpu_custom_call.1} parent=0
    #allocation2 [shape = 'u8[4096]{0}', space=vmem, size = 0x1000, scoped, tag = 'input window, operand 0, single buffered']
    #allocation3 [shape = 's32[1]{0}', space=sflag, size = 0x4, scoped, tag = 'scoped memory for tpu_custom_call.1']
    #allocation4 [shape = 's32[1]{0}', space=sflag, size = 0x4, scoped, tag = 'scoped memory for tpu_custom_call.1']
    #allocation5 [shape = 'u8[139264]{0}', space=vmem, size = 0x22000, scoped, tag = 'input window, operand 1, single buffered']
    #allocation6 [shape = 's32[1]{0}', space=sflag, size = 0x4, scoped, tag = 'scoped memory for tpu_custom_call.1']
    #allocation7 [shape = 'u8[4096]{0}', space=vmem, size = 0x1000, scoped, tag = 'output window, operand 0, single buffered']
    %7 = vsyncpa [#allocation3], 0
    %8 = vsyncpa [#allocation6], 0
    %9 = vsyncpa [#allocation4], 0
    // Predicated region
    $region2: #{tpu_custom_call.1} parent=1 // pred_check
      _
    $region3: #{tpu_custom_call.1} parent=1 // pred_check_branch
      %11 = sbr.rel (0) target = $region5
    $region4: #{tpu_custom_call.1} parent=1 // pred_region
      %s13 = ssub.s32 128, 128
      %14 = vsyncadd [#allocation3], %s13
      %s16 = sshll.u32 [#allocation2], 4
      %s17 = int_to_ptr.vmem [resolvable:$true] %s16
      %19 = dma.hbm_to_vmem [thread:$0]  %s0, 128, %s17, [#allocation3]
    $region5: #{tpu_custom_call.1} parent=1 // pred_fallthru
      _
    // Predicated region
    $region6: #{tpu_custom_call.1} parent=1 // pred_check
      _
    $region7: #{tpu_custom_call.1} parent=1 // pred_check_branch
      %21 = sbr.rel (0) target = $region9
    $region8: #{tpu_custom_call.1} parent=1 // pred_region
      %s23 = ssub.s32 4352, 4352
      %24 = vsyncadd [#allocation6], %s23
      %s25 = sshll.u32 [#allocation5], 4
      %s26 = int_to_ptr.vmem [resolvable:$true] %s25
      %31 = dma.hbm_to_vmem [thread:$0]  %s1, 4352, %s26, [#allocation6], 256, 256, 16
    $region9: #{tpu_custom_call.1} parent=1 // pred_fallthru
      _
    // Predicated region
    $region10: #{tpu_custom_call.1} parent=1 // pred_check
      _
    $region11: #{tpu_custom_call.1} parent=1 // pred_check_branch
      %33 = sbr.rel (0) target = $region13
    $region12: #{tpu_custom_call.1} parent=1 // pred_region
      %34 = dma.done [#allocation3], 128
    $region13: #{tpu_custom_call.1} parent=1 // pred_fallthru
      _
    // Predicated region
    $region14: #{tpu_custom_call.1} parent=1 // pred_check
      _
    $region15: #{tpu_custom_call.1} parent=1 // pred_check_branch
      %36 = sbr.rel (0) target = $region17
    $region16: #{tpu_custom_call.1} parent=1 // pred_region
      %37 = dma.done [#allocation6], 4352
    $region17: #{tpu_custom_call.1} parent=1 // pred_fallthru
      _
    %v38 = vld [vmem:[#allocation2] sm:$0xff]
    %v39 = vld [vmem:[#allocation5] sm:$0xff]
    %v40 = vld [vmem:[#allocation5 + $0x8] sm:$0xff]
    %v41 = vld [vmem:[#allocation5 + $0x10] sm:$0xff]
    %v42 = vld [vmem:[#allocation5 + $0x18] sm:$0xff]
    %v43 = vld [vmem:[#allocation5 + $0x20] sm:$0xff]
    %v44 = vld [vmem:[#allocation5 + $0x28] sm:$0xff]
    %v45 = vld [vmem:[#allocation5 + $0x30] sm:$0xff]
    %v46 = vld [vmem:[#allocation5 + $0x38] sm:$0xff]
    %v47 = vld [vmem:[#allocation5 + $0x40] sm:$0xff]
    %v48 = vld [vmem:[#allocation5 + $0x48] sm:$0xff]
    %v49 = vld [vmem:[#allocation5 + $0x50] sm:$0xff]
    %v50 = vld [vmem:[#allocation5 + $0x58] sm:$0xff]
    %v51 = vld [vmem:[#allocation5 + $0x60] sm:$0xff]
    %v52 = vld [vmem:[#allocation5 + $0x68] sm:$0xff]
    %v53 = vld [vmem:[#allocation5 + $0x70] sm:$0xff]
    %v54 = vld [vmem:[#allocation5 + $0x78] sm:$0xff]
    %v55 = vld [vmem:[#allocation5 + $0x80] sm:$0xff]
    %v56 = vld [vmem:[#allocation5 + $0x88] sm:$0xff]
    %v57 = vld [vmem:[#allocation5 + $0x90] sm:$0xff]
    %v58 = vld [vmem:[#allocation5 + $0x98] sm:$0xff]
    %v59 = vld [vmem:[#allocation5 + $0xa0] sm:$0xff]
    %v60 = vld [vmem:[#allocation5 + $0xa8] sm:$0xff]
    %v61 = vld [vmem:[#allocation5 + $0xb0] sm:$0xff]
    %v62 = vld [vmem:[#allocation5 + $0xb8] sm:$0xff]
    %v63 = vld [vmem:[#allocation5 + $0xc0] sm:$0xff]
    %v64 = vld [vmem:[#allocation5 + $0xc8] sm:$0xff]
    %v65 = vld [vmem:[#allocation5 + $0xd0] sm:$0xff]
    %v66 = vld [vmem:[#allocation5 + $0xd8] sm:$0xff]
    %v67 = vld [vmem:[#allocation5 + $0xe0] sm:$0xff]
    %v68 = vld [vmem:[#allocation5 + $0xe8] sm:$0xff]
    %v69 = vld [vmem:[#allocation5 + $0xf0] sm:$0xff]
    %v70 = vld [vmem:[#allocation5 + $0xf8] sm:$0xff]
    %71 = vmatprep.subr.mxu0 %v70
    %72 = vmatpush1.msra.mxu0 %v69
    %73 = vmatprep.subr.mxu0 %v68
    %74 = vmatpush1.msra.mxu0 %v67
    %75 = vmatprep.subr.mxu0 %v66
    %76 = vmatpush1.msra.mxu0 %v65
    %77 = vmatprep.subr.mxu0 %v64
    %78 = vmatpush1.msra.mxu0 %v63
    %79 = vmatprep.subr.mxu0 %v62
    %80 = vmatpush1.msra.mxu0 %v61
    %81 = vmatprep.subr.mxu0 %v60
    %82 = vmatpush1.msra.mxu0 %v59
    %83 = vmatprep.subr.mxu0 %v58
    %84 = vmatpush1.msra.mxu0 %v57
    %85 = vmatprep.subr.mxu0 %v56
    %86 = vmatpush1.msra.mxu0 %v55
    %87 = vmatprep.subr.mxu0 %v54
    %88 = vmatpush1.msra.mxu0 %v53
    %89 = vmatprep.subr.mxu0 %v52
    %90 = vmatpush1.msra.mxu0 %v51
    %91 = vmatprep.subr.mxu0 %v50
    %92 = vmatpush1.msra.mxu0 %v49
    %93 = vmatprep.subr.mxu0 %v48
    %94 = vmatpush1.msra.mxu0 %v47
    %95 = vmatprep.subr.mxu0 %v46
    %96 = vmatpush1.msra.mxu0 %v45
    %97 = vmatprep.subr.mxu0 %v44
    %98 = vmatpush1.msra.mxu0 %v43
    %99 = vmatprep.subr.mxu0 %v42
    %100 = vmatpush1.msra.mxu0 %v41
    %101 = vmatprep.subr.mxu0 %v40
    %102 = vmatpush1.msra.mxu0 %v39
    %103 = vmatprep.subr.mxu0 0.0
    %104 = vmatpush2.msra.mxu0 0.0
    %105 = vmatprep.subr.mxu0 0.0
    %106 = vmatpush2.msra.mxu0 0.0
    %107 = vmatprep.subr.mxu0 0.0
    %108 = vmatpush2.msra.mxu0 0.0
    %109 = vmatprep.subr.mxu0 0.0
    %110 = vmatpush2.msra.mxu0 0.0
    %111 = vmatprep.subr.mxu0 0.0
    %112 = vmatpush2.msra.mxu0 0.0
    %113 = vmatprep.subr.mxu0 0.0
    %114 = vmatpush2.msra.mxu0 0.0
    %115 = vmatprep.subr.mxu0 0.0
    %116 = vmatpush2.msra.mxu0 0.0
    %117 = vmatprep.subr.mxu0 0.0
    %118 = vmatpush2.msra.mxu0 0.0
    %119 = vmatprep.subr.mxu0 0.0
    %120 = vmatpush2.msra.mxu0 0.0
    %121 = vmatprep.subr.mxu0 0.0
    %122 = vmatpush2.msra.mxu0 0.0
    %123 = vmatprep.subr.mxu0 0.0
    %124 = vmatpush2.msra.mxu0 0.0
    %125 = vmatprep.subr.mxu0 0.0
    %126 = vmatpush2.msra.mxu0 0.0
    %127 = vmatprep.subr.mxu0 0.0
    %128 = vmatpush2.msra.mxu0 0.0
    %129 = vmatprep.subr.mxu0 0.0
    %130 = vmatpush2.msra.mxu0 0.0
    %131 = vmatprep.subr.mxu0 0.0
    %132 = vmatpush2.msra.mxu0 0.0
    %133 = vmatprep.subr.mxu0 0.0
    %134 = vmatpush2.msra.mxu0 0.0
    %135 = vmatprep.mubr.f32.mxu0 0.0
    %136 = vmatmul.mubr.f32.gmra.mxu0 %v38
    %v137 = vpop.f32.mrf.mxu0
    %v138 = vadd.f32 0.0, %v137
    %v139 = vpop.f32.mrf.mxu0
    %v140 = vadd.f32 0.0, %v139
    %141 = vdwg.mxu0
    %v142 = vld [vmem:[#allocation5 + $0x100] sm:$0xff]
    %143 = vadd.xlane.f32.xlu0 %v138
    %v144 = vpop.xlane.xlu0 %143
    %v145 = vmul.f32 %v144, 0.020833334
    %v146 = vmul.f32 %v138, %v138
    %147 = vadd.xlane.f32.xlu0 %v146
    %v148 = vpop.xlane.xlu0 %147
    %v149 = vmul.f32 %v148, 0.020833334
    %v150 = vmul.f32 %v145, %v145
    %v151 = vsub.f32 %v149, %v150
    %v152 = vsub.f32 %v138, %v145
    %v153 = vadd.f32 %v151, 0.001
    %v154 = vrsqrt.pop %v153
    %v155 = vmul.f32 %v152, %v154
    %v156 = vlaneseq
    %v157 = vshrl.u32 %v156, 7
    %v158 = vsub.s32 0, %v157
    %v159 = vrot.slane %v142, %v158
    %v160 = vmul.f32 %v155, %v159
    %v161 = vlaneseq
    %v162 = vshrl.u32 %v161, 7
    %v163 = vsub.s32 1, %v162
    %v164 = vrot.slane %v142, %v163
    %v165 = vadd.f32 %v160, %v164
    %v166 = vlaneseq
    %v167 = vshrl.u32 %v166, 7
    %v168 = vsub.s32 2, %v167
    %v169 = vrot.slane %v142, %v168
    %v170 = vmul.f32 %v165, %v169
    %171 = vadd.xlane.f32.xlu0 %v170
    %v172 = vpop.xlane.xlu0 %171
    %173 = vadd.xlane.f32.xlu0 %v140
    %v174 = vpop.xlane.xlu0 %173
    %v175 = vmul.f32 %v174, 0.020833334
    %v176 = vmul.f32 %v140, %v140
    %177 = vadd.xlane.f32.xlu0 %v176
    %v178 = vpop.xlane.xlu0 %177
    %v179 = vmul.f32 %v178, 0.020833334
    %v180 = vmul.f32 %v175, %v175
    %v181 = vsub.f32 %v179, %v180
    %v182 = vsub.f32 %v140, %v175
    %v183 = vadd.f32 %v181, 0.001
    %v184 = vrsqrt.pop %v183
    %v185 = vmul.f32 %v182, %v184
    %v186 = vmul.f32 %v185, %v159
    %v187 = vadd.f32 %v186, %v164
    %v188 = vmul.f32 %v187, %v169
    %189 = vadd.xlane.f32.xlu0 %v188
    %v190 = vpop.xlane.xlu0 %189
    %v191 = vsub.f32 %v190, %v172
    %v192 = vmul.f32 %v191, 1.442695
    %v193 = vpow.pop %v192
    %v194 = vadd.f32 %v193, 1.0
    %v195 = vrcp.pop %v194
    %v196 = vmul.f32 1.0, %v195
    %v197 = vsub.f32 1.0, %v196
    %v198 = vlaneseq
    %v199 = vshrl.u32 %v198, 7
    %v200 = vsub.s32 3, %v199
    %v201 = vrot.slane %v142, %v200
    %v202 = vadd.f32 %v165, %v201
    %v203 = vmul.f32 %v196, %v202
    %v204 = vlaneseq
    %v205 = vshrl.u32 %v204, 7
    %v206 = vsub.s32 4, %v205
    %v207 = vrot.slane %v142, %v206
    %v208 = vadd.f32 %v187, %v207
    %v209 = vmul.f32 %v197, %v208
    %v210 = vadd.f32 %v203, %v209
    %211 = vst [vmem:[#allocation7] sm:$0xff] %v210
    // Predicated region
    $region18: #{tpu_custom_call.1} parent=1 // pred_check
      _
    $region19: #{tpu_custom_call.1} parent=1 // pred_check_branch
      %213 = sbr.rel (0) target = $region21
    $region20: #{tpu_custom_call.1} parent=1 // pred_region
      %s215 = ssub.s32 128, 128
      %216 = vsyncadd [#allocation4], %s215
      %s218 = sshll.u32 [#allocation7], 4
      %s219 = int_to_ptr.vmem [resolvable:$true] %s218
      %221 = dma.vmem_to_hbm [thread:$0]  %s219, 128, %s2, [#allocation4]
    $region21: #{tpu_custom_call.1} parent=1 // pred_fallthru
      _
    // Predicated region
    $region22: #{tpu_custom_call.1} parent=1 // pred_check
      _
    $region23: #{tpu_custom_call.1} parent=1 // pred_check_branch
      %223 = sbr.rel (0) target = $region25
    $region24: #{tpu_custom_call.1} parent=1 // pred_region
      %224 = dma.done [#allocation4], 128
    $region25: #{tpu_custom_call.1} parent=1 // pred_fallthru
      _
    %225 = vsyncpa [#allocation3], 1
    %226 = vsyncpa [#allocation6], 1
    %227 = vsyncpa [#allocation4], 1

</llo_original>
